<compile_context>
chip_gen: v7x
topology: tpu7x:2x2x1
jax: 0.10.0
libtpu: 0.0.40
codegen_flags: <defaults>
</compile_context>

<pallas_src>
import math

import jax
import jax.numpy as jnp
from jax.experimental import pallas as pl
from jax.experimental.pallas import tpu as pltpu

_TQ_MAX = 256    # query tile (rows of scores materialized at once)
_TKC_MAX = 512   # key-block size for the blockwise causal prefix sum


def _hw_config():
    """Generation-aware tile maxima / scoped-VMEM limit.  Conservative on failure."""
    cap = 0
    try:
        cap = int(getattr(pltpu.get_tpu_info(), "vmem_capacity_bytes", 0))
    except Exception:
        cap = 0
    if cap >= (100 << 20):   # v5e / v6e: 128 MiB physical VMEM
        return {"vmem_limit": 96 << 20, "tm": 512, "tn": 256, "tk": 1024}
    # v7x (64 MiB) or unknown: stay conservative
    return {"vmem_limit": 44 << 20, "tm": 256, "tn": 256, "tk": 512}


def _choose_tile(dim, max_tile, align):
    """Largest aligned tile <= max_tile that divides dim; full dim if none (no padding)."""
    if dim <= max_tile:
        return dim
    t = (max_tile // align) * align
    while t >= align:
        if dim % t == 0:
            return t
        t -= align
    return dim


# ----------------------------------------------------------------------------
# Tiled linear (y = x @ w + b), bf16 MXU operands, f32 VMEM accumulator, bf16 out
# ----------------------------------------------------------------------------
def _linear_kernel(x_ref, w_ref, b_ref, o_ref, acc_ref):
    k = pl.program_id(2)

    @pl.when(k == 0)
    def _():
        acc_ref[...] = jnp.zeros_like(acc_ref)

    acc_ref[...] += jnp.dot(x_ref[...].astype(jnp.bfloat16), w_ref[...],
                            preferred_element_type=jnp.float32)

    @pl.when(k == pl.num_programs(2) - 1)
    def _():
        o_ref[...] = (acc_ref[...] + b_ref[...]).astype(o_ref.dtype)


def pallas_linear_bf16(x, w_bf16, b_f32, cfg):
    """y = x @ w + b with x:(M,K) f32, w:(K,N) bf16, b:(N,) f32 -> (M,N) bf16."""
    M, K = x.shape
    N = w_bf16.shape[1]

    tm = _choose_tile(M, cfg["tm"], 16)
    tk = _choose_tile(K, cfg["tk"], 128)
    tn = _choose_tile(N, cfg["tn"], 128)
    grid = (M // tm, N // tn, K // tk)

    b2 = b_f32.reshape(1, N)

    return pl.pallas_call(
        _linear_kernel,
        out_shape=jax.ShapeDtypeStruct((M, N), jnp.bfloat16),
        grid=grid,
        in_specs=[
            pl.BlockSpec((tm, tk), lambda i, j, k: (i, k)),
            pl.BlockSpec((tk, tn), lambda i, j, k: (k, j)),
            pl.BlockSpec((1, tn), lambda i, j, k: (0, j)),
        ],
        out_specs=pl.BlockSpec((tm, tn), lambda i, j, k: (i, j)),
        scratch_shapes=[pltpu.VMEM((tm, tn), jnp.float32)],
        compiler_params=pltpu.CompilerParams(
            dimension_semantics=("parallel", "parallel", "arbitrary"),
            vmem_limit_bytes=cfg["vmem_limit"]),
        cost_estimate=pl.CostEstimate(
            flops=int(2 * M * N * K),
            transcendentals=0,
            bytes_accessed=int(4 * M * K + 2 * K * N + 2 * M * N + 4 * N)),
    )(x, w_bf16, b2)


# ----------------------------------------------------------------------------
# Fused triplet-attention + out-projection kernel.
# Grid = (B, num_query_tiles).  qkvt slab (keys side) is resident per batch.
# ----------------------------------------------------------------------------
def _make_attn_kernel(H, hd, D, T, tq, nq, tkc):
    inv_sqrt_hd = 1.0 / math.sqrt(hd)
    cdims = (((1,), (1,)), ((), ()))   # contract last dims: a @ b^T without .T
    nkb = T // tkc

    def kernel(qkvt_ref, w_out_ref, b_out_ref, o_ref, cs_ref, attn_ref):
        qi = pl.program_id(1)

        slab = qkvt_ref[0]                         # (T, 4D) bf16, lane-dense
        k_all = slab[:, 1 * D:2 * D]               # (T, D) bf16
        v_all = slab[:, 2 * D:3 * D]               # (T, D) bf16

        # ---- once per batch: causal prefix-sum of k*v/sqrt(hd) over ALL heads at
        #      once, blockwise with an iota-generated block-tril (no (T,T) HBM tril).
        @pl.when(qi == 0)
        def _():
            r = jax.lax.broadcasted_iota(jnp.int32, (tkc, tkc), 0)
            c = jax.lax.broadcasted_iota(jnp.int32, (tkc, tkc), 1)
            tril_blk = (r >= c).astype(jnp.bfloat16)
            carry = jnp.zeros((1, D), jnp.float32)
            for j in range(nkb):                   # static unroll over key blocks
                lo, hi = j * tkc, (j + 1) * tkc
                kvj = (k_all[lo:hi].astype(jnp.float32)
                       * v_all[lo:hi].astype(jnp.float32) * inv_sqrt_hd)
                blk = jnp.dot(tril_blk, kvj.astype(jnp.bfloat16),
                              preferred_element_type=jnp.float32) + carry
                cs_ref[lo:hi, :] = blk.astype(jnp.bfloat16)
                carry = carry + jnp.sum(kvj, axis=0, keepdims=True)

        # ---- per query tile ----
        q0 = pl.multiple_of(qi * tq, tq)
        if nq == 1:
            qrows = slab                           # whole sequence is the tile
        else:
            qrows = qkvt_ref[0, pl.ds(q0, tq), :]  # (tq, 4D) bf16
        q_rows = qrows[:, 0 * D:1 * D]
        t_rows = qrows[:, 3 * D:4 * D]
        qt_rows = (q_rows.astype(jnp.float32)
                   * t_rows.astype(jnp.float32)).astype(jnp.bfloat16)

        rows = jax.lax.broadcasted_iota(jnp.int32, (tq, T), 0) + q0
        cols = jax.lax.broadcasted_iota(jnp.int32, (tq, T), 1)
        causal = rows >= cols                      # hoisted out of the head loop

        for h in range(H):                         # static unroll over heads
            lo, hi = h * hd, (h + 1) * hd
            # fused score matmul, K = 2*hd : [q_h | (q*t)_h] @ [k_h | cumsum_h]^T
            a = jnp.concatenate([q_rows[:, lo:hi], qt_rows[:, lo:hi]], axis=-1)
            bm = jnp.concatenate([k_all[:, lo:hi], cs_ref[:, lo:hi]], axis=-1)
            s = jax.lax.dot_general(a, bm, cdims,
                                    preferred_element_type=jnp.float32) * inv_sqrt_hd
            # keep the masked select before max (numerically robust; see review note)
            s = jnp.where(causal, s, -1e30)

            m = jnp.max(s, axis=-1, keepdims=True)
            p = jnp.exp(s - m)
            denom = jnp.sum(p, axis=-1, keepdims=True)
            attn = p * pl.reciprocal(denom, approx=True)

            hv = jnp.dot(attn.astype(jnp.bfloat16), v_all[:, lo:hi],
                         preferred_element_type=jnp.float32)     # (tq, hd)
            attn_ref[:, lo:hi] = hv                # per-head store, bounded live range

        # fused output projection epilogue (no second (B,T,D) HBM round trip)
        y = jnp.dot(attn_ref[...].astype(jnp.bfloat16), w_out_ref[...],
                    preferred_element_type=jnp.float32)
        o_ref[0] = (y + b_out_ref[...]).astype(o_ref.dtype)

    return kernel


# ----------------------------------------------------------------------------
# Forward wrapper (no host-side transposes or padding anywhere)
# ----------------------------------------------------------------------------
def triplet_attention_forward(x, params, num_heads):
    B, T, D = x.shape
    H = num_heads
    hd = D // H
    cfg = _hw_config()

    # one-time parameter prep: bf16 MXU weights, f32 biases
    w_qkvt = params["w_qkvt"].astype(jnp.bfloat16)
    b_qkvt = params["b_qkvt"].astype(jnp.float32)
    w_out = params["w_out"].astype(jnp.bfloat16)
    b_out = params["b_out"].astype(jnp.float32).reshape(1, D)

    # qkvt projection; output stays packed (B, T, 4D) in bf16
    qkvt = pallas_linear_bf16(x.reshape(B * T, D), w_qkvt, b_qkvt, cfg)
    qkvt = qkvt.reshape(B, T, 4 * D)

    tq = T if (T <= _TQ_MAX or T % _TQ_MAX != 0) else _TQ_MAX
    nq = T // tq
    tkc = T if (T <= _TKC_MAX or T % _TKC_MAX != 0) else _TKC_MAX

    out = pl.pallas_call(
        _make_attn_kernel(H, hd, D, T, tq, nq, tkc),
        out_shape=jax.ShapeDtypeStruct((B, T, D), jnp.float32),
        grid=(B, nq),
        in_specs=[
            pl.BlockSpec((1, T, 4 * D), lambda b, qi: (b, 0, 0)),  # keys: resident per b
            pl.BlockSpec((D, D), lambda b, qi: (0, 0)),            # w_out: resident
            pl.BlockSpec((1, D), lambda b, qi: (0, 0)),            # b_out: resident
        ],
        out_specs=pl.BlockSpec((1, tq, D), lambda b, qi: (b, qi, 0)),
        scratch_shapes=[
            pltpu.VMEM((T, D), jnp.bfloat16),    # cumsum(k*v/sqrt(hd)), all heads
            pltpu.VMEM((tq, D), jnp.float32),    # per-head attention output staging
        ],
        compiler_params=pltpu.CompilerParams(
            dimension_semantics=("parallel", "arbitrary"),
            vmem_limit_bytes=cfg["vmem_limit"]),
        cost_estimate=pl.CostEstimate(
            flops=int(2 * B * T * tkc * D + 6 * B * T * T * D + 2 * B * T * D * D),
            transcendentals=int(B * H * T * T),
            bytes_accessed=int(2 * B * T * 4 * D + 4 * B * T * D + 2 * D * D + 4 * D)),
    )(qkvt, w_out, b_out)

    return out


# ----------------------------------------------------------------------------
# Pure-JAX reference (mirrors the PyTorch forward) for correctness checking.
# ----------------------------------------------------------------------------
def reference_forward(x, params, num_heads):
    B, T, D = x.shape
    H = num_heads
    hd = D // H
    scale = 1.0 / math.sqrt(hd)

    qkvt = x.reshape(B * T, D) @ params["w_qkvt"] + params["b_qkvt"]
    qkvt = qkvt.reshape(B, T, 4, H, hd)
    q, k, v, t = [jnp.transpose(qkvt[:, :, i], (0, 2, 1, 3)) for i in range(4)]

    scores_dot = jnp.einsum("bhqd,bhkd->bhqk", q, k)
    kv = k * v * scale
    cs = jnp.cumsum(kv, axis=2)
    scores_triplet = jnp.einsum("bhqd,bhkd->bhqk", q * t, cs)
    scores = (scores_dot + scores_triplet) * scale

    mask = jnp.triu(jnp.ones((T, T), dtype=bool), k=1)
    scores = jnp.where(mask[None, None], -jnp.inf, scores)
    scores = scores - jnp.max(scores, axis=-1, keepdims=True)
    w = jax.nn.softmax(scores, axis=-1)
    out = jnp.einsum("bhqk,bhkd->bhqd", w, v)
    out = jnp.transpose(out, (0, 2, 1, 3)).reshape(B * T, D)
    y = out @ params["w_out"] + params["b_out"]
    return y.reshape(B, T, D)


# ----------------------------------------------------------------------------
# Main
# ----------------------------------------------------------------------------
if __name__ == "__main__":
    B, T, D, H = 2, 8, 32, 4

    key = jax.random.PRNGKey(0)
    kx, k1, k2, k3, k4 = jax.random.split(key, 5)

    x = jax.random.normal(kx, (B, T, D), dtype=jnp.float32)

    # Deterministic parameter init (shapes follow nn.Linear(d_model, 4*d_model) and
    # nn.Linear(d_model, d_model); stored transposed so y = x @ W + b).
    params = {
        "w_qkvt": 0.02 * jax.random.normal(k1, (D, 4 * D), dtype=jnp.float32),
        "b_qkvt": 0.02 * jax.random.normal(k2, (4 * D,), dtype=jnp.float32),
        "w_out": 0.02 * jax.random.normal(k3, (D, D), dtype=jnp.float32),
        "b_out": 0.02 * jax.random.normal(k4, (D,), dtype=jnp.float32),
    }

    y = triplet_attention_forward(x, params, H)
    y = jax.block_until_ready(y)

    y_ref = reference_forward(x, params, H)
    # tolerance accommodates bf16 MXU operands (~2^-9 rel) and the EUP approximate
    # reciprocal (~2^-12 rel) used for the softmax normalization.
    err = float(jnp.max(jnp.abs(y - y_ref)))
    assert jnp.allclose(y, y_ref, atol=2e-2, rtol=2e-2), (
        f"mismatch: max abs err = {err}"
    )

    print("KERNEL_OK")
</pallas_src>

<mosaic_0001>
module attributes {stable_mosaic.version = 11 : i64} {
  func.func @_linear_kernel(%arg0: i32, %arg1: i32, %arg2: i32, %arg3: memref<16x32xf32, #tpu.memory_space<vmem>>, %arg4: memref<32x128xbf16, #tpu.memory_space<vmem>>, %arg5: memref<1x128xf32, #tpu.memory_space<vmem>>, %arg6: memref<16x128xbf16, #tpu.memory_space<vmem>>, %arg7: memref<16x128xf32, #tpu.memory_space<vmem>>) attributes {dimension_semantics = [#tpu.dimension_semantics<parallel>, #tpu.dimension_semantics<parallel>, #tpu.dimension_semantics<arbitrary>], iteration_bounds = array<i64: 1, 1, 1>, scalar_prefetch = 0 : i64, scratch_operands = 1 : i64, tpu.core_type = #tpu.core_type<tc>, window_params = [{transform_indices = @transform_0, window_bounds = array<i64: 16, 32>}, {transform_indices = @transform_1, window_bounds = array<i64: 32, 128>}, {transform_indices = @transform_2, window_bounds = array<i64: 1, 128>}, {transform_indices = @transform_3, window_bounds = array<i64: 16, 128>}]} {
    %c0_i32 = arith.constant 0 : i32
    %0 = arith.cmpi eq, %arg2, %c0_i32 : i32
    %1 = arith.extui %0 : i1 to i32
    %c0_i32_0 = arith.constant 0 : i32
    %2 = arith.cmpi ne, %1, %c0_i32_0 : i32
    scf.if %2 {
      %cst_10 = arith.constant 0.000000e+00 : f32
      %13 = vector.broadcast %cst_10 : f32 to vector<16x128xf32>
      %c0_11 = arith.constant 0 : index
      %c0_12 = arith.constant 0 : index
      %14 = vector.load %arg7[%c0_11, %c0_12] : memref<16x128xf32, #tpu.memory_space<vmem>>, vector<16x128xf32>
      tpu.vector_store %arg7[%c0_11, %c0_12], %13 {strides = array<i32>} : memref<16x128xf32, #tpu.memory_space<vmem>>, vector<16x128xf32>,
    } else {
    }
    %c0 = arith.constant 0 : index
    %c0_1 = arith.constant 0 : index
    %3 = vector.load %arg7[%c0, %c0_1] : memref<16x128xf32, #tpu.memory_space<vmem>>, vector<16x128xf32>
    %c0_2 = arith.constant 0 : index
    %c0_3 = arith.constant 0 : index
    %4 = vector.load %arg3[%c0_2, %c0_3] : memref<16x32xf32, #tpu.memory_space<vmem>>, vector<16x32xf32>
    %5 = arith.truncf %4 : vector<16x32xf32> to vector<16x32xbf16>
    %c0_4 = arith.constant 0 : index
    %c0_5 = arith.constant 0 : index
    %6 = vector.load %arg4[%c0_4, %c0_5] : memref<32x128xbf16, #tpu.memory_space<vmem>>, vector<32x128xbf16>
    %cst = arith.constant dense<0.000000e+00> : vector<16x128xf32>
    %7 = tpu.matmul %5, %6, %cst {dimension_numbers = #tpu.dot_dimension_numbers<[1], [0], [0], [1], [0, 0, 1, 1], [], []>} : vector<16x32xbf16>, vector<32x128xbf16>, vector<16x128xf32> -> vector<16x128xf32>
    %8 = arith.addf %3, %7 : vector<16x128xf32>
    %c0_6 = arith.constant 0 : index
    %c0_7 = arith.constant 0 : index
    %9 = vector.load %arg7[%c0_6, %c0_7] : memref<16x128xf32, #tpu.memory_space<vmem>>, vector<16x128xf32>
    tpu.vector_store %arg7[%c0_6, %c0_7], %8 {strides = array<i32>} : memref<16x128xf32, #tpu.memory_space<vmem>>, vector<16x128xf32>,
    %c0_i32_8 = arith.constant 0 : i32
    %10 = arith.cmpi eq, %arg2, %c0_i32_8 : i32
    %11 = arith.extui %10 : i1 to i32
    %c0_i32_9 = arith.constant 0 : i32
    %12 = arith.cmpi ne, %11, %c0_i32_9 : i32
    scf.if %12 {
      %c0_10 = arith.constant 0 : index
      %c0_11 = arith.constant 0 : index
      %13 = vector.load %arg7[%c0_10, %c0_11] : memref<16x128xf32, #tpu.memory_space<vmem>>, vector<16x128xf32>
      %c0_12 = arith.constant 0 : index
      %c0_13 = arith.constant 0 : index
      %14 = vector.load %arg5[%c0_12, %c0_13] : memref<1x128xf32, #tpu.memory_space<vmem>>, vector<1x128xf32>
      %15 = vector.broadcast %14 : vector<1x128xf32> to vector<16x128xf32>
      %16 = arith.addf %13, %15 : vector<16x128xf32>
      %17 = arith.truncf %16 : vector<16x128xf32> to vector<16x128xbf16>
      %c0_14 = arith.constant 0 : index
      %c0_15 = arith.constant 0 : index
      %18 = vector.load %arg6[%c0_14, %c0_15] : memref<16x128xbf16, #tpu.memory_space<vmem>>, vector<16x128xbf16>
      tpu.vector_store %arg6[%c0_14, %c0_15], %17 {strides = array<i32>} : memref<16x128xbf16, #tpu.memory_space<vmem>>, vector<16x128xbf16>,
    } else {
    }
    return
  }
  func.func @transform_0(%arg0: i32, %arg1: i32, %arg2: i32) -> (i32, i32) {
    %c0_i32 = arith.constant 0 : i32
    return %arg0, %arg2 : i32, i32
  }
  func.func @transform_1(%arg0: i32, %arg1: i32, %arg2: i32) -> (i32, i32) {
    %c0_i32 = arith.constant 0 : i32
    return %arg2, %arg1 : i32, i32
  }
  func.func @transform_2(%arg0: i32, %arg1: i32, %arg2: i32) -> (i32, i32) {
    %c0_i32 = arith.constant 0 : i32
    %c0_i32_0 = arith.constant 0 : i32
    return %c0_i32, %arg1 : i32, i32
  }
  func.func @transform_3(%arg0: i32, %arg1: i32, %arg2: i32) -> (i32, i32) {
    %c0_i32 = arith.constant 0 : i32
    return %arg0, %arg1 : i32, i32
  }
}

</mosaic_0001>

<llo_original>
// kernel: tpu_custom_call.1
$region0: #{tpu_custom_call.1}
  #allocation0 [shape = 'u32[]', space=smem, size = 0x4, offset = 0x4, fixed_abs, tag = 'smem constant byte address 0x4 - core index']
  #allocation1 [shape = 'u32[144,128]{1,0:T(1,128)}', space=vmem, size = 0x12000, scoped, tag = 'internal scratch']
  #allocation2 [shape = 'f32[16,128]{1,0:T(8,128)}', space=vmem, size = 0x2000, scoped, tag = 'scratch operand']
  %s0 = inlined_call_operand.hbm [shape: f32[16,32], index: 0, kind: input, shape index: {}]
  %s1 = inlined_call_operand.hbm [shape: bf16[32,128], index: 1, kind: input, shape index: {}]
  %s2 = inlined_call_operand.vmem [shape: f32[1,128], index: 2, kind: input, shape index: {}]
  %s3 = inlined_call_operand.hbm [shape: bf16[16,128], index: 3, kind: output, shape index: {}]
  %s4 = sld [smem:[#allocation0]]
  $region38: #{tpu_custom_call.1} parent=0
    _
  %s6 = ssub.s32 1, %s4
  %s7 = scalar_select 0, %s6, %s4
  $region1: #{tpu_custom_call.1} parent=0
    #allocation3 [shape = 'u8[8192]{0}', space=vmem, size = 0x2000, scoped, tag = 'input window, operand 0, single buffered']
    #allocation4 [shape = 's32[1]{0}', space=sflag, size = 0x4, scoped, tag = 'scoped memory for tpu_custom_call.1']
    #allocation5 [shape = 's32[1]{0}', space=sflag, size = 0x4, scoped, tag = 'scoped memory for tpu_custom_call.1']
    #allocation6 [shape = 'u8[8192]{0}', space=vmem, size = 0x2000, scoped, tag = 'input window, operand 1, single buffered']
    #allocation7 [shape = 's32[1]{0}', space=sflag, size = 0x4, scoped, tag = 'scoped memory for tpu_custom_call.1']
    #allocation8 [shape = 'u8[4096]{0}', space=vmem, size = 0x1000, scoped, tag = 'output window, operand 0, single buffered']
    %8 = vsyncpa [#allocation4], 0
    %9 = vsyncpa [#allocation7], 0
    %10 = vsyncpa [#allocation5], 0
    // Predicated region
    $region2: #{tpu_custom_call.1} parent=1 // pred_check
      _
    $region3: #{tpu_custom_call.1} parent=1 // pred_check_branch
      %12 = sbr.rel (0) target = $region5
    $region4: #{tpu_custom_call.1} parent=1 // pred_region
      %s14 = ssub.s32 256, 256
      %15 = vsyncadd [#allocation4], %s14
      %s16 = sshll.u32 [#allocation3], 4
      %s17 = int_to_ptr.vmem [resolvable:$true] %s16
      %22 = dma.hbm_to_vmem [thread:$0]  %s0, 256, %s17, [#allocation4], 128, 128, 8
    $region5: #{tpu_custom_call.1} parent=1 // pred_fallthru
      _
    // Predicated region
    $region6: #{tpu_custom_call.1} parent=1 // pred_check
      _
    $region7: #{tpu_custom_call.1} parent=1 // pred_check_branch
      %24 = sbr.rel (0) target = $region9
    $region8: #{tpu_custom_call.1} parent=1 // pred_region
      %s26 = ssub.s32 256, 256
      %27 = vsyncadd [#allocation7], %s26
      %s28 = sshll.u32 [#allocation6], 4
      %s29 = int_to_ptr.vmem [resolvable:$true] %s28
      %34 = dma.hbm_to_vmem [thread:$0]  %s1, 256, %s29, [#allocation7], 64, 64, 4
    $region9: #{tpu_custom_call.1} parent=1 // pred_fallthru
      _
    // Predicated region
    $region10: #{tpu_custom_call.1} parent=1 // pred_check
      _
    $region11: #{tpu_custom_call.1} parent=1 // pred_check_branch
      %36 = sbr.rel (0) target = $region13
    $region12: #{tpu_custom_call.1} parent=1 // pred_region
      _
    $region13: #{tpu_custom_call.1} parent=1 // pred_fallthru
      _
    // Predicated region
    $region14: #{tpu_custom_call.1} parent=1 // pred_check
      _
    $region15: #{tpu_custom_call.1} parent=1 // pred_check_branch
      %38 = sbr.rel (0) target = $region17
    $region16: #{tpu_custom_call.1} parent=1 // pred_region
      %39 = dma.done [#allocation4], 256
    $region17: #{tpu_custom_call.1} parent=1 // pred_fallthru
      _
    // Predicated region
    $region18: #{tpu_custom_call.1} parent=1 // pred_check
      _
    $region19: #{tpu_custom_call.1} parent=1 // pred_check_branch
      %41 = sbr.rel (0) target = $region21
    $region20: #{tpu_custom_call.1} parent=1 // pred_region
      %42 = dma.done [#allocation7], 256
    $region21: #{tpu_custom_call.1} parent=1 // pred_fallthru
      _
    %p44 = scmp.eq.s32.totalorder 0, 0
    // Predicated region
    $region22: #{tpu_custom_call.1} parent=1 // pred_check
      %p45 = pneg %p44
    $region23: #{tpu_custom_call.1} parent=1 // pred_check_branch
      %47 = sbr.rel (%p45) target = $region25
    $region24: #{tpu_custom_call.1} parent=1 // pred_region
      %48 = vst [vmem:[#allocation2] sm:$0xff] 0.0
      %49 = vst [vmem:[#allocation2 + $0x8] sm:$0xff] 0.0
    $region25: #{tpu_custom_call.1} parent=1 // pred_fallthru
      _
    %v50 = vld [vmem:[#allocation2] sm:$0xff]
    %v51 = vld [vmem:[#allocation2 + $0x8] sm:$0xff]
    %v52 = vld [vmem:[#allocation3] sm:$0xff]
    %v53 = vld [vmem:[#allocation3 + $0x8] sm:$0xff]
    %v54 = vpack.c.bf16 %v53, %v52
    %v55 = vld [vmem:[#allocation6] sm:$0xf]
    %v56 = vld [vmem:[#allocation6 + $0x4] sm:$0xf]
    %v57 = vld [vmem:[#allocation6 + $0x8] sm:$0xf]
    %v58 = vld [vmem:[#allocation6 + $0xc] sm:$0xf]
    %v63 = vunpack.c.l.b16 %v55
    %v64 = vunpack.c.l.b16 %v56
    %v65 = vunpack.c.l.b16 %v57
    %v66 = vunpack.c.l.b16 %v58
    %v67 = vpack.c.b16 %v64, %v63
    %v68 = vpack.c.b16 %v66, %v65
    %vm71 = vcmask 261120
    %v73 = vsel %vm71, %v54, 0
    %75 = vmatprep.subr.bf16.mxu0 0
    %76 = vmatpush1.bf16.msra.mxu0 %v67
    %77 = vmatprep.subr.bf16.mxu0 0
    %78 = vmatpush1.bf16.msra.mxu0 %v68
    %79 = vmatprep.subr.bf16.mxu0 0
    %80 = vmatpush1.bf16.msra.mxu0 0
    %81 = vmatprep.subr.bf16.mxu0 0
    %82 = vmatpush1.bf16.msra.mxu0 0
    %83 = vmatprep.subr.bf16.mxu0 0
    %84 = vmatpush1.bf16.msra.mxu0 0
    %85 = vmatprep.subr.bf16.mxu0 0
    %86 = vmatpush1.bf16.msra.mxu0 0
    %87 = vmatprep.subr.bf16.mxu0 0
    %88 = vmatpush1.bf16.msra.mxu0 0
    %89 = vmatprep.subr.bf16.mxu0 0
    %90 = vmatpush1.bf16.msra.mxu0 0
    %91 = vmatprep.subr.bf16.mxu0 0
    %92 = vmatpush1.bf16.msra.mxu0 0
    %93 = vmatprep.subr.bf16.mxu0 0
    %94 = vmatpush1.bf16.msra.mxu0 0
    %95 = vmatprep.subr.bf16.mxu0 0
    %96 = vmatpush1.bf16.msra.mxu0 0
    %97 = vmatprep.subr.bf16.mxu0 0
    %98 = vmatpush1.bf16.msra.mxu0 0
    %99 = vmatprep.subr.bf16.mxu0 0
    %100 = vmatpush1.bf16.msra.mxu0 0
    %101 = vmatprep.subr.bf16.mxu0 0
    %102 = vmatpush1.bf16.msra.mxu0 0
    %103 = vmatprep.subr.bf16.mxu0 0
    %104 = vmatpush1.bf16.msra.mxu0 0
    %105 = vmatprep.subr.bf16.mxu0 0
    %106 = vmatpush1.bf16.msra.mxu0 0
    %107 = vmatprep.mubr.bf16.mxu0 0
    %108 = vmatmul.mubr.bf16.gmra.mrb[0].mxu0 %v73
    %v109 = vpop.f32.mrb[0].mxu0
    %v110 = vadd.f32 0.0, %v109
    %v111 = vpop.f32.mrb[0].mxu0
    %v112 = vpop.f32.mrb[0].mxu0
    %v113 = vadd.f32 0.0, %v112
    %v114 = vpop.f32.mrb[0].mxu0
    %115 = vdwg.mxu0
    %v116 = vadd.f32 %v50, %v110
    %v117 = vadd.f32 %v51, %v113
    %118 = vst [vmem:[#allocation2] sm:$0xff] %v116
    %119 = vst [vmem:[#allocation2 + $0x8] sm:$0xff] %v117
    // Predicated region
    $region26: #{tpu_custom_call.1} parent=1 // pred_check
      %p120 = pneg %p44
    $region27: #{tpu_custom_call.1} parent=1 // pred_check_branch
      %122 = sbr.rel (%p120) target = $region29
    $region28: #{tpu_custom_call.1} parent=1 // pred_region
      %v123 = vld [vmem:[#allocation2] sm:$0xff]
      %v124 = vld [vmem:[#allocation2 + $0x8] sm:$0xff]
      %v125 = vld [vmem:[%s2] sm:$0x1]
      %v127 = vlaneseq
      %v128 = vshrl.u32 %v127, 7
      %v129 = vsub.s32 0, %v128
      %v130 = vrot.slane %v125, %v129
      %v132 = vadd.f32 %v123, %v130
      %v133 = vadd.f32 %v124, %v130
      %v134 = vpack.c.bf16 %v133, %v132
      %v136 = vunpack.c.l.b16 %v134
      %v137 = vunpack.c.h.b16 %v134
      %v138 = vpack.c.b16 %v136, %v136
      %v139 = vpack.c.b16 %v137, %v137
      %142 = vst [vmem:[#allocation8] sm:$0xf] %v138
      %143 = vst [vmem:[#allocation8 + $0x4] sm:$0xf] %v139
    $region29: #{tpu_custom_call.1} parent=1 // pred_fallthru
      _
    // Predicated region
    $region30: #{tpu_custom_call.1} parent=1 // pred_check
      _
    $region31: #{tpu_custom_call.1} parent=1 // pred_check_branch
      %145 = sbr.rel (0) target = $region33
    $region32: #{tpu_custom_call.1} parent=1 // pred_region
      %s147 = ssub.s32 128, 128
      %148 = vsyncadd [#allocation5], %s147
      %s149 = sshll.u32 [#allocation8], 4
      %s150 = int_to_ptr.vmem [resolvable:$true] %s149
      %155 = dma.vmem_to_hbm [thread:$0]  %s150, 128, %s3, [#allocation5], 64, 64, 4
    $region33: #{tpu_custom_call.1} parent=1 // pred_fallthru
      _
    // Predicated region
    $region34: #{tpu_custom_call.1} parent=1 // pred_check
      _
    $region35: #{tpu_custom_call.1} parent=1 // pred_check_branch
      %157 = sbr.rel (0) target = $region37
    $region36: #{tpu_custom_call.1} parent=1 // pred_region
      %158 = dma.done [#allocation5], 128
    $region37: #{tpu_custom_call.1} parent=1 // pred_fallthru
      _
    %159 = vsyncpa [#allocation4], 1
    %160 = vsyncpa [#allocation7], 1
    %161 = vsyncpa [#allocation5], 1

</llo_original>
